<compile_context>
chip_gen: v6e
topology: v6e:2x2x1
jax: 0.10.0
libtpu: 0.0.40
codegen_flags: <defaults>
</compile_context>

<pallas_src>
import functools
import math

import numpy as np
import jax
import jax.numpy as jnp
from jax import lax
from jax.experimental import pallas as pl
from jax.experimental.pallas import tpu as pltpu

LEAKY_SLOPE = 0.01   # PyTorch nn.LeakyReLU default negative_slope
LANE = 128


def _round_up(x, m):
    return ((x + m - 1) // m) * m


def _cdiv(a, b):
    return (a + b - 1) // b


def _choose_tiling(B, batch_tile):
    """Pick (tile, nsteps, B_pad): rows padded only to the 8-row sublane multiple,
    tile balanced across steps (no near-full-tile overshoot), and >=2 grid steps
    whenever the batch can be split (v7x megacore)."""
    B8 = _round_up(B, 8)
    nsteps = max(_cdiv(B8, batch_tile), 2 if B8 >= 16 else 1)
    tile = _round_up(_cdiv(B8, nsteps), 8)
    nsteps = _cdiv(B8, tile)
    return tile, nsteps, tile * nsteps


# -----------------------------------------------------------------------------
# Pallas kernel: packed multi-head MLP over one batch tile.
#   x_ref : (tile, K)         packed input (obs [, one-hot actions])
#   w0_ref: (K, N)            layer-0 weights, heads concatenated along out_dim
#   wl_ref: (L-1, N, N)       block-diagonal packed weights for layers 1..L-1
#   b_ref : (L, N)            packed biases, one row per layer
#   o_ref : (tile, N)         lane-dense output slab (single full-width store)
# act_spec[s] = (n_tanh_cols, n_real_cols) for the activation after layer s;
# tanh heads are packed first so the mask is a simple column threshold.
# -----------------------------------------------------------------------------
def _packed_mlp_kernel(x_ref, w0_ref, wl_ref, b_ref, o_ref, *, n_layers, act_spec):
    h = jnp.dot(x_ref[...], w0_ref[...], preferred_element_type=jnp.float32)
    h = h + b_ref[0:1, :]
    for l in range(1, n_layers):
        n_tanh, n_real = act_spec[l - 1]
        if n_tanh == 0:
            h = jnp.where(h >= 0.0, h, LEAKY_SLOPE * h)
        elif n_tanh == n_real:
            h = jnp.tanh(h)
        else:
            cols = lax.broadcasted_iota(jnp.int32, h.shape, 1)
            h = jnp.where(cols < n_tanh, jnp.tanh(h),
                          jnp.where(h >= 0.0, h, LEAKY_SLOPE * h))
        h = jnp.dot(h, wl_ref[l - 1], preferred_element_type=jnp.float32)
        h = h + b_ref[l:l + 1, :]
    o_ref[...] = h.astype(o_ref.dtype)   # one unmasked lane-dense store


# -----------------------------------------------------------------------------
# Weight packing (done once at model construction, in numpy).
# heads: list of (params, activation, in_start); params = [(W (in, out), b (out,)),...]
#        layer-0 W consumes the input slice [in_start, in_start + W.shape[0]).
# tanh-activated heads must precede leaky_relu heads.
# -----------------------------------------------------------------------------
def pack_heads(heads, in_dim):
    L = len(heads[0][0])
    assert L >= 2
    for p, a, _ in heads:
        assert len(p) == L, "all packed heads must have equal depth"
        assert a in ("tanh", "leaky_relu")
    acts = [a for _, a, _ in heads]
    n_tanh_heads = sum(1 for a in acts if a == "tanh")
    assert all(a == "tanh" for a in acts[:n_tanh_heads])
    assert all(a == "leaky_relu" for a in acts[n_tanh_heads:]), \
        "tanh heads must precede leaky_relu heads"

    head_w = [[int(p[l][0].shape[1]) for p, _, _ in heads] for l in range(L)]
    packed_w = [max(LANE, _round_up(sum(w), LANE)) for w in head_w]
    assert len(set(packed_w)) == 1, "packed layer widths must be uniform to stack"
    N = packed_w[0]

    offs = []
    for l in range(L):
        o, cur = [], 0
        for w in head_w[l]:
            o.append(cur)
            cur += w
        offs.append(o)

    w0 = np.zeros((in_dim, N), np.float32)
    for h, (p, _, in_start) in enumerate(heads):
        W = np.asarray(p[0][0], np.float32)
        w0[in_start:in_start + W.shape[0], offs[0][h]:offs[0][h] + W.shape[1]] = W

    w_stack = np.zeros((L - 1, N, N), np.float32)
    for l in range(1, L):
        for h, (p, _, _) in enumerate(heads):
            W = np.asarray(p[l][0], np.float32)
            w_stack[l - 1,
                    offs[l - 1][h]:offs[l - 1][h] + W.shape[0],
                    offs[l][h]:offs[l][h] + W.shape[1]] = W

    biases = np.zeros((L, N), np.float32)
    for l in range(L):
        for h, (p, _, _) in enumerate(heads):
            b = np.asarray(p[l][1], np.float32)
            biases[l, offs[l][h]:offs[l][h] + b.shape[0]] = b

    act_spec = tuple(
        (sum(head_w[s][:n_tanh_heads]), sum(head_w[s])) for s in range(L - 1)
    )
    out_cols = [(offs[L - 1][h], head_w[L - 1][h]) for h in range(len(heads))]

    return dict(
        w0=jnp.asarray(w0), w_stack=jnp.asarray(w_stack), biases=jnp.asarray(biases),
        act_spec=act_spec, out_cols=out_cols, n_layers=L, width=N, in_dim=in_dim,
    )


# -----------------------------------------------------------------------------
# Wrapper: pads the batch, builds BlockSpecs, attaches a CostEstimate, and slices
# the lane-dense output slab back into per-head outputs.
# -----------------------------------------------------------------------------
def packed_mlp_forward(x, packed, *, batch_tile=512):
    B, K = int(x.shape[0]), int(x.shape[1])
    assert K == packed["in_dim"]
    tile, nsteps, B_pad = _choose_tiling(B, batch_tile)

    x = x.astype(jnp.float32)
    if B_pad != B:
        x = jnp.pad(x, ((0, B_pad - B), (0, 0)))

    w0, w_stack, biases = packed["w0"], packed["w_stack"], packed["biases"]
    L, N = packed["n_layers"], packed["width"]

    flops = 2 * B_pad * (K * N + (L - 1) * N * N)
    transcendentals = B_pad * sum(nt for nt, _ in packed["act_spec"])
    bytes_accessed = (
        B_pad * K * 4 + int(w0.size) * 4 + int(w_stack.size) * 4
        + int(biases.size) * 4 + B_pad * N * 4
    )

    kernel = functools.partial(
        _packed_mlp_kernel, n_layers=L, act_spec=packed["act_spec"]
    )

    out = pl.pallas_call(
        kernel,
        out_shape=jax.ShapeDtypeStruct((B_pad, N), jnp.float32),
        grid=(nsteps,),
        in_specs=[
            pl.BlockSpec((tile, K), lambda i: (i, 0)),
            pl.BlockSpec(w0.shape, lambda i: (0, 0)),          # VMEM-resident
            pl.BlockSpec(w_stack.shape, lambda i: (0, 0, 0)),  # VMEM-resident
            pl.BlockSpec(biases.shape, lambda i: (0, 0)),      # VMEM-resident
        ],
        out_specs=pl.BlockSpec((tile, N), lambda i: (i, 0)),
        compiler_params=pltpu.CompilerParams(
            dimension_semantics=("parallel",),
        ),
        cost_estimate=pl.CostEstimate(
            flops=flops, transcendentals=transcendentals, bytes_accessed=bytes_accessed
        ),
    )(x, w0, w_stack, biases)

    # Padded rows B..B_pad-1 contain activation(bias) garbage; sliced off here.
    return [out[:B, c0:c0 + w] for c0, w in packed["out_cols"]]


# -----------------------------------------------------------------------------
# Deterministic parameter init (mimics nn.Linear's U(-1/sqrt(fan_in), +))
# -----------------------------------------------------------------------------
def init_linear(key, in_dim, out_dim):
    kw, kb = jax.random.split(key)
    bound = 1.0 / math.sqrt(in_dim)
    w = jax.random.uniform(kw, (in_dim, out_dim), jnp.float32, -bound, bound)
    b = jax.random.uniform(kb, (out_dim,), jnp.float32, -bound, bound)
    return w, b


def init_mlp(key, dims):
    keys = jax.random.split(key, len(dims) - 1)
    return [init_linear(k, d1, d2) for k, d1, d2 in zip(keys, dims[:-1], dims[1:])]


def _apply_act(h, activation):
    if activation == "tanh":
        return jnp.tanh(h)
    if activation == "leaky_relu":
        return jnp.where(h >= 0.0, h, LEAKY_SLOPE * h)
    raise ValueError(activation)


def mlp_reference(x, params, activation):
    """Pure-JAX f32 reference (matches the PyTorch module semantics)."""
    h = x
    for i, (w, b) in enumerate(params):
        h = h @ w + b
        if i < len(params) - 1:
            h = _apply_act(h, activation)
    return h


# -----------------------------------------------------------------------------
# RewardModel (JAX / Pallas version)
# -----------------------------------------------------------------------------
class RewardModelPallas:
    def __init__(
        self,
        key,
        obs_flat_dim,
        num_actions,               # Discrete action space: flatdim == n
        num_outputs,
        reward_model_width=32,
        reward_model_depth=2,
        policy_hiddens=(32, 32),   # TorchFC fcnet_hiddens (tanh), scaled down
        normalize_obs=None,
        batch_tile=512,
    ):
        self.obs_flat_dim = obs_flat_dim
        self.num_actions = num_actions
        self.num_outputs = num_outputs
        self.normalize_obs = normalize_obs
        self.batch_tile = batch_tile

        k_rew, k_pol, k_val = jax.random.split(key, 3)

        # fc_reward_net: [obs_dim + num_actions] + [width]*depth + [1], LeakyReLU
        # between layers (rows of W0: obs first, one-hot actions second).
        rew_dims = [obs_flat_dim + num_actions] + [reward_model_width] * reward_model_depth + [1]
        self.reward_params = init_mlp(k_rew, rew_dims)

        # TorchFC policy net: tanh hiddens -> logits; separate tanh value branch.
        pol_dims = [obs_flat_dim] + list(policy_hiddens) + [num_outputs]
        val_dims = [obs_flat_dim] + list(policy_hiddens) + [1]
        self.policy_params = init_mlp(k_pol, pol_dims)
        self.value_params = init_mlp(k_val, val_dims)

        # Packed weights: policy + value share one kernel launch; reward has its own.
        self._policy_value_packed = pack_heads(
            [(self.policy_params, "tanh", 0), (self.value_params, "tanh", 0)],
            in_dim=obs_flat_dim,
        )
        self._reward_packed = pack_heads(
            [(self.reward_params, "leaky_relu", 0)],
            in_dim=obs_flat_dim + num_actions,
        )

        self._value = None

    def get_initial_state(self):
        return [jnp.zeros((1,), jnp.float32)]

    def forward(self, input_dict, state=None, seq_lens=None):
        if state is None:
            state = self.get_initial_state()
        obs = input_dict["obs"]
        obs_flat = obs.reshape(obs.shape[0], -1).astype(jnp.float32)
        logits, value = packed_mlp_forward(
            obs_flat, self._policy_value_packed, batch_tile=self.batch_tile
        )
        self._value = value.reshape(-1)
        return logits, [s + 1 for s in state]

    def value_function(self):
        assert self._value is not None, "call forward() first"
        return self._value

    def learned_reward(self, input_dict):
        obs = input_dict["obs"]
        actions = input_dict["actions"]
        obs_flat = obs.reshape(obs.shape[0], -1).astype(jnp.float32)
        if self.normalize_obs is not None:
            # TODO(synk): PyTorch normalizes obs in-place; applied functionally here.
            obs_flat = self.normalize_obs(obs_flat)
        onehot = jax.nn.one_hot(actions.astype(jnp.int32), self.num_actions,
                                dtype=jnp.float32)
        net_input = jnp.concatenate([obs_flat, onehot], axis=1)
        (reward,) = packed_mlp_forward(
            net_input, self._reward_packed, batch_tile=self.batch_tile
        )
        return reward


# -----------------------------------------------------------------------------
if __name__ == "__main__":
    key = jax.random.PRNGKey(0)
    k_model, k_obs, k_act = jax.random.split(key, 3)

    B = 16
    obs_shape = (2, 4, 4)                 # flat obs dim = 32
    num_actions = 8                       # Discrete(8)
    num_outputs = num_actions             # logits size for discrete policy

    obs = jax.random.normal(k_obs, (B,) + obs_shape, dtype=jnp.float32)
    actions = jax.random.randint(k_act, (B,), 0, num_actions, dtype=jnp.int32)
    input_dict = {"obs": obs, "actions": actions}

    model = RewardModelPallas(
        k_model,
        obs_flat_dim=int(math.prod(obs_shape)),
        num_actions=num_actions,
        num_outputs=num_outputs,
        reward_model_width=32,
        reward_model_depth=2,
        policy_hiddens=(32, 32),
    )

    logits, new_state = model.forward(input_dict, model.get_initial_state())
    values = model.value_function()
    rewards = model.learned_reward(input_dict)
    actions2 = (actions + 1) % num_actions
    rewards2 = model.learned_reward({"obs": obs, "actions": actions2})

    jax.block_until_ready((logits, new_state, values, rewards, rewards2))

    # Shape checks.
    assert logits.shape == (B, num_outputs)
    assert values.shape == (B,)
    assert rewards.shape == (B, 1)
    assert rewards2.shape == (B, 1)
    assert new_state[0].shape == (1,) and float(new_state[0][0]) == 1.0

    # Numerical check vs. pure-JAX f32 reference (f32 weights on the MXU).
    obs_flat = obs.reshape(B, -1)
    onehot = jax.nn.one_hot(actions, num_actions, dtype=jnp.float32)
    onehot2 = jax.nn.one_hot(actions2, num_actions, dtype=jnp.float32)
    ref_logits = mlp_reference(obs_flat, model.policy_params, "tanh")
    ref_values = mlp_reference(obs_flat, model.value_params, "tanh").reshape(-1)
    ref_rewards = mlp_reference(
        jnp.concatenate([obs_flat, onehot], axis=1), model.reward_params, "leaky_relu"
    )
    ref_rewards2 = mlp_reference(
        jnp.concatenate([obs_flat, onehot2], axis=1), model.reward_params, "leaky_relu"
    )
    assert jnp.allclose(logits, ref_logits, atol=2e-2, rtol=2e-2)
    assert jnp.allclose(values, ref_values, atol=2e-2, rtol=2e-2)
    assert jnp.allclose(rewards, ref_rewards, atol=2e-2, rtol=2e-2)
    assert jnp.allclose(rewards2, ref_rewards2, atol=2e-2, rtol=2e-2)

    print("KERNEL_OK")
</pallas_src>

<mosaic_0001>
module attributes {stable_mosaic.version = 11 : i64} {
  func.func @_packed_mlp_kernel(%arg0: i32, %arg1: memref<8x32xf32, #tpu.memory_space<vmem>>, %arg2: memref<32x128xf32, #tpu.memory_space<vmem>>, %arg3: memref<2x128x128xf32, #tpu.memory_space<vmem>>, %arg4: memref<3x128xf32, #tpu.memory_space<vmem>>, %arg5: memref<8x128xf32, #tpu.memory_space<vmem>>) attributes {dimension_semantics = [#tpu.dimension_semantics<parallel>], iteration_bounds = array<i64: 2>, scalar_prefetch = 0 : i64, scratch_operands = 0 : i64, tpu.core_type = #tpu.core_type<tc>, window_params = [{transform_indices = @transform_0, window_bounds = array<i64: 8, 32>}, {pipeline_mode = #tpu.pipeline_mode<synchronous>, transform_indices = @transform_1, window_bounds = array<i64: 32, 128>}, {pipeline_mode = #tpu.pipeline_mode<synchronous>, transform_indices = @transform_2, window_bounds = array<i64: 2, 128, 128>}, {pipeline_mode = #tpu.pipeline_mode<synchronous>, transform_indices = @transform_3, window_bounds = array<i64: 3, 128>}, {transform_indices = @transform_4, window_bounds = array<i64: 8, 128>}]} {
    %c0 = arith.constant 0 : index
    %c0_0 = arith.constant 0 : index
    %0 = vector.load %arg1[%c0, %c0_0] : memref<8x32xf32, #tpu.memory_space<vmem>>, vector<8x32xf32>
    %c0_1 = arith.constant 0 : index
    %c0_2 = arith.constant 0 : index
    %1 = vector.load %arg2[%c0_1, %c0_2] : memref<32x128xf32, #tpu.memory_space<vmem>>, vector<32x128xf32>
    %cst = arith.constant dense<0.000000e+00> : vector<8x128xf32>
    %2 = tpu.matmul %0, %1, %cst {dimension_numbers = #tpu.dot_dimension_numbers<[1], [0], [0], [1], [0, 0, 1, 1], [], []>} : vector<8x32xf32>, vector<32x128xf32>, vector<8x128xf32> -> vector<8x128xf32>
    %c0_3 = arith.constant 0 : index
    %c0_4 = arith.constant 0 : index
    %3 = vector.load %arg4[%c0_3, %c0_4] : memref<3x128xf32, #tpu.memory_space<vmem>>, vector<1x128xf32>
    %4 = vector.broadcast %3 : vector<1x128xf32> to vector<8x128xf32>
    %5 = arith.addf %2, %4 : vector<8x128xf32>
    %6 = math.tanh %5 : vector<8x128xf32>
    %c0_5 = arith.constant 0 : index
    %c0_6 = arith.constant 0 : index
    %c0_7 = arith.constant 0 : index
    %7 = vector.load %arg3[%c0_5, %c0_6, %c0_7] : memref<2x128x128xf32, #tpu.memory_space<vmem>>, vector<1x128x128xf32>
    %8 = vector.shape_cast %7 : vector<1x128x128xf32> to vector<128x128xf32>
    %cst_8 = arith.constant dense<0.000000e+00> : vector<8x128xf32>
    %9 = tpu.matmul %6, %8, %cst_8 {dimension_numbers = #tpu.dot_dimension_numbers<[1], [0], [0], [1], [0, 0, 1, 1], [], []>} : vector<8x128xf32>, vector<128x128xf32>, vector<8x128xf32> -> vector<8x128xf32>
    %c1 = arith.constant 1 : index
    %c0_9 = arith.constant 0 : index
    %10 = vector.load %arg4[%c1, %c0_9] : memref<3x128xf32, #tpu.memory_space<vmem>>, vector<1x128xf32>
    %11 = vector.broadcast %10 : vector<1x128xf32> to vector<8x128xf32>
    %12 = arith.addf %9, %11 : vector<8x128xf32>
    %13 = math.tanh %12 : vector<8x128xf32>
    %c1_10 = arith.constant 1 : index
    %c0_11 = arith.constant 0 : index
    %c0_12 = arith.constant 0 : index
    %14 = vector.load %arg3[%c1_10, %c0_11, %c0_12] : memref<2x128x128xf32, #tpu.memory_space<vmem>>, vector<1x128x128xf32>
    %15 = vector.shape_cast %14 : vector<1x128x128xf32> to vector<128x128xf32>
    %cst_13 = arith.constant dense<0.000000e+00> : vector<8x128xf32>
    %16 = tpu.matmul %13, %15, %cst_13 {dimension_numbers = #tpu.dot_dimension_numbers<[1], [0], [0], [1], [0, 0, 1, 1], [], []>} : vector<8x128xf32>, vector<128x128xf32>, vector<8x128xf32> -> vector<8x128xf32>
    %c2 = arith.constant 2 : index
    %c0_14 = arith.constant 0 : index
    %17 = vector.load %arg4[%c2, %c0_14] : memref<3x128xf32, #tpu.memory_space<vmem>>, vector<1x128xf32>
    %18 = vector.broadcast %17 : vector<1x128xf32> to vector<8x128xf32>
    %19 = arith.addf %16, %18 : vector<8x128xf32>
    %c0_15 = arith.constant 0 : index
    %c0_16 = arith.constant 0 : index
    %20 = vector.load %arg5[%c0_15, %c0_16] : memref<8x128xf32, #tpu.memory_space<vmem>>, vector<8x128xf32>
    tpu.vector_store %arg5[%c0_15, %c0_16], %19 {strides = array<i32>} : memref<8x128xf32, #tpu.memory_space<vmem>>, vector<8x128xf32>,
    return
  }
  func.func @transform_0(%arg0: i32) -> (i32, i32) {
    %c0_i32 = arith.constant 0 : i32
    %c0_i32_0 = arith.constant 0 : i32
    return %arg0, %c0_i32 : i32, i32
  }
  func.func @transform_1(%arg0: i32) -> (i32, i32) {
    %c0_i32 = arith.constant 0 : i32
    %c0_i32_0 = arith.constant 0 : i32
    %c0_i32_1 = arith.constant 0 : i32
    return %c0_i32, %c0_i32_0 : i32, i32
  }
  func.func @transform_2(%arg0: i32) -> (i32, i32, i32) {
    %c0_i32 = arith.constant 0 : i32
    %c0_i32_0 = arith.constant 0 : i32
    %c0_i32_1 = arith.constant 0 : i32
    %c0_i32_2 = arith.constant 0 : i32
    return %c0_i32, %c0_i32_0, %c0_i32_1 : i32, i32, i32
  }
  func.func @transform_3(%arg0: i32) -> (i32, i32) {
    %c0_i32 = arith.constant 0 : i32
    %c0_i32_0 = arith.constant 0 : i32
    %c0_i32_1 = arith.constant 0 : i32
    return %c0_i32, %c0_i32_0 : i32, i32
  }
  func.func @transform_4(%arg0: i32) -> (i32, i32) {
    %c0_i32 = arith.constant 0 : i32
    %c0_i32_0 = arith.constant 0 : i32
    return %arg0, %c0_i32 : i32, i32
  }
}

</mosaic_0001>

<llo_original>
// kernel: tpu_custom_call.1
$region0: #{tpu_custom_call.1}
  #allocation0 [shape = 'u32[]', space=smem, size = 0x4, offset = 0x4, fixed_abs, tag = 'smem constant byte address 0x4 - core index']
  #allocation1 [shape = 'u32[144,128]{1,0:T(1,128)}', space=vmem, size = 0x12000, scoped, tag = 'internal scratch']
  %s0 = inlined_call_operand.hbm [shape: f32[16,32], index: 0, kind: input, shape index: {}]
  %s1 = inlined_call_operand.hbm [shape: f32[32,128], index: 1, kind: input, shape index: {}]
  %s2 = inlined_call_operand.hbm [shape: f32[2,128,128], index: 2, kind: input, shape index: {}]
  %s3 = inlined_call_operand.vmem [shape: f32[3,128], index: 3, kind: input, shape index: {}]
  %s4 = inlined_call_operand.hbm [shape: f32[16,128], index: 4, kind: output, shape index: {}]
  %s5 = sld [smem:[#allocation0]]
  $region61: #{tpu_custom_call.1} parent=0
    _
  %s7 = ssub.s32 1, %s5
  %s8 = scalar_select 0, %s7, %s5
  $region1: #{tpu_custom_call.1} parent=0
    #allocation2 [shape = 'u8[8192]{0}', space=vmem, size = 0x2000, scoped, tag = 'input window, operand 0']
    #allocation3 [shape = 's32[2]{0}', space=sflag, size = 0x8, scoped, tag = 'scoped memory for tpu_custom_call.1']
    #allocation4 [shape = 's32[2]{0}', space=sflag, size = 0x8, scoped, tag = 'scoped memory for tpu_custom_call.1']
    #allocation5 [shape = 'u8[16384]{0}', space=vmem, size = 0x4000, scoped, tag = 'input window, operand 1, single buffered']
    #allocation6 [shape = 's32[1]{0}', space=sflag, size = 0x4, scoped, tag = 'scoped memory for tpu_custom_call.1']
    #allocation7 [shape = 'u8[131072]{0}', space=vmem, size = 0x20000, scoped, tag = 'input window, operand 2, single buffered']
    #allocation8 [shape = 'u8[8192]{0}', space=vmem, size = 0x2000, scoped, tag = 'output window, operand 0']
    %9 = vsyncpa [#allocation3], 0
    %s10 = scalar_lea.sflag [#allocation3], 1
    %11 = vsyncpa %s10, 0
    %12 = vsyncpa [#allocation6], 0
    %13 = vsyncpa [#allocation4], 0
    %s14 = scalar_lea.sflag [#allocation4], 1
    %15 = vsyncpa %s14, 0
    loop: start=0, step=1, limit=4
    $region2: #{tpu_custom_call.1} parent=1 // loop_pre_header
      _
    $region3: #{tpu_custom_call.1} parent=1 // loop_header
      %s17 = sphi 0, %s21
      %p18 = scmp.ge.s32.totalorder %s17, 4
      %s27 = sphi 0, %s29
      %s30 = sphi 0, %s27
      %s31 = sphi 0, %s30
      %s47 = sphi 0, %s31
      %s51 = sphi 0, %s51
      %s53 = sphi 0, %s51
      %s54 = sphi 0, %s53
      %s68 = sphi 0, %s54
      %s72 = sphi 0, %s72
      %s74 = sphi 0, %s72
      %s75 = sphi 0, %s74
      %s89 = sphi 0, %s75
      %s93 = sphi 0, %s93
      %s95 = sphi 0, %s93
      %s96 = sphi 0, %s95
      %s110 = sphi 0, %s96
      %s116 = sphi 0, %s118
      %s119 = sphi 0, %s116
      %s120 = sphi 0, %s119
      %s136 = sphi 0, %s120
    $region4: #{tpu_custom_call.1} parent=1 // loop_header_branch
      %20 = sbr.rel (%p18) target = $region8
    $region5: #{tpu_custom_call.1} parent=1 // loop_body
      %s22 = ssub.s32 %s17, 1
      %s23 = ssub.s32 %s17, 2
      %s24 = sadd.s32 %s17, 1
      %s25 = ssub.s32 %s17, %s24
      %p26 = scmp.eq.s32.totalorder %s25, 0
      %s28 = sadd.s32 %s27, 1
      %s29 = scalar_select %p26, %s27, %s28
      %p32 = pneg %p26
      %p33 = scmp.eq.s32.totalorder %s17, 1
      %p34 = por %p32, %p33
      %p35 = scmp.ne.s32.totalorder %s27, %s30
      %p36 = scmp.eq.s32.totalorder %s17, 0
      %p37 = por %p35, %p36
      %p38 = scmp.ne.s32.totalorder %s27, %s30
      %p39 = scmp.eq.s32.totalorder %s22, 1
      %p40 = por %p38, %p39
      %p41 = scmp.ne.s32.totalorder %s30, %s31
      %p42 = scmp.eq.s32.totalorder %s22, 0
      %p43 = por %p41, %p42
      %p44 = scmp.ne.s32.totalorder %s30, %s31
      %p45 = scmp.eq.s32.totalorder %s23, 1
      %p46 = por %p44, %p45
      %p48 = scmp.ne.s32.totalorder %s31, %s47
      %p49 = scmp.eq.s32.totalorder %s23, 0
      %p50 = por %p48, %p49
      %s52 = sadd.s32 %s51, 1
      %p55 = scmp.eq.s32.totalorder %s17, 1
      %p56 = scmp.ne.s32.totalorder %s51, %s53
      %p57 = scmp.eq.s32.totalorder %s17, 0
      %p58 = por %p56, %p57
      %p59 = scmp.ne.s32.totalorder %s51, %s53
      %p60 = scmp.eq.s32.totalorder %s22, 1
      %p61 = por %p59, %p60
      %p62 = scmp.ne.s32.totalorder %s53, %s54
      %p63 = scmp.eq.s32.totalorder %s22, 0
      %p64 = por %p62, %p63
      %p65 = scmp.ne.s32.totalorder %s53, %s54
      %p66 = scmp.eq.s32.totalorder %s23, 1
      %p67 = por %p65, %p66
      %p69 = scmp.ne.s32.totalorder %s54, %s68
      %p70 = scmp.eq.s32.totalorder %s23, 0
      %p71 = por %p69, %p70
      %s73 = sadd.s32 %s72, 1
      %p76 = scmp.eq.s32.totalorder %s17, 1
      %p77 = scmp.ne.s32.totalorder %s72, %s74
      %p78 = scmp.eq.s32.totalorder %s17, 0
      %p79 = por %p77, %p78
      %p80 = scmp.ne.s32.totalorder %s72, %s74
      %p81 = scmp.eq.s32.totalorder %s22, 1
      %p82 = por %p80, %p81
      %p83 = scmp.ne.s32.totalorder %s74, %s75
      %p84 = scmp.eq.s32.totalorder %s22, 0
      %p85 = por %p83, %p84
      %p86 = scmp.ne.s32.totalorder %s74, %s75
      %p87 = scmp.eq.s32.totalorder %s23, 1
      %p88 = por %p86, %p87
      %p90 = scmp.ne.s32.totalorder %s75, %s89
      %p91 = scmp.eq.s32.totalorder %s23, 0
      %p92 = por %p90, %p91
      %s94 = sadd.s32 %s93, 1
      %p97 = scmp.eq.s32.totalorder %s17, 1
      %p98 = scmp.ne.s32.totalorder %s93, %s95
      %p99 = scmp.eq.s32.totalorder %s17, 0
      %p100 = por %p98, %p99
      %p101 = scmp.ne.s32.totalorder %s93, %s95
      %p102 = scmp.eq.s32.totalorder %s22, 1
      %p103 = por %p101, %p102
      %p104 = scmp.ne.s32.totalorder %s95, %s96
      %p105 = scmp.eq.s32.totalorder %s22, 0
      %p106 = por %p104, %p105
      %p107 = scmp.ne.s32.totalorder %s95, %s96
      %p108 = scmp.eq.s32.totalorder %s23, 1
      %p109 = por %p107, %p108
      %p111 = scmp.ne.s32.totalorder %s96, %s110
      %p112 = scmp.eq.s32.totalorder %s23, 0
      %p113 = por %p111, %p112
      %s114 = ssub.s32 %s17, %s24
      %p115 = scmp.eq.s32.totalorder %s114, 0
      %s117 = sadd.s32 %s116, 1
      %s118 = scalar_select %p115, %s116, %s117
      %p121 = pneg %p115
      %p122 = scmp.eq.s32.totalorder %s17, 1
      %p123 = por %p121, %p122
      %p124 = scmp.ne.s32.totalorder %s116, %s119
      %p125 = scmp.eq.s32.totalorder %s17, 0
      %p126 = por %p124, %p125
      %p127 = scmp.ne.s32.totalorder %s116, %s119
      %p128 = scmp.eq.s32.totalorder %s22, 1
      %p129 = por %p127, %p128
      %p130 = scmp.ne.s32.totalorder %s119, %s120
      %p131 = scmp.eq.s32.totalorder %s22, 0
      %p132 = por %p130, %p131
      %p133 = scmp.ne.s32.totalorder %s119, %s120
      %p134 = scmp.eq.s32.totalorder %s23, 1
      %p135 = por %p133, %p134
      %p137 = scmp.ne.s32.totalorder %s120, %s136
      %p138 = scmp.eq.s32.totalorder %s23, 0
      %p139 = por %p137, %p138
      %p140 = scmp.le.s32.totalorder 1, %s17
      %p141 = scmp.lt.s32.totalorder %s17, 3
      %p142 = pnand %p140, %p141
      %p143 = pneg %p142
      // Predicated region
      $region9: #{tpu_custom_call.1} parent=5 // pred_check
        _
      $region10: #{tpu_custom_call.1} parent=5 // pred_check_branch
        %145 = sbr.rel (%p142) target = $region12
      $region11: #{tpu_custom_call.1} parent=5 // pred_region
        %s146 = ssub.s32 %s17, 1
        // Predicated region
        $region13: #{tpu_custom_call.1} parent=11 // pred_check
          %p147 = pneg %p64
        $region14: #{tpu_custom_call.1} parent=11 // pred_check_branch
          %149 = sbr.rel (%p147) target = $region16
        $region15: #{tpu_custom_call.1} parent=11 // pred_region
          %s151 = ssub.s32 512, 512
          %152 = vsyncadd [#allocation6], %s151
          %s153 = sshll.u32 [#allocation5], 4
          %s154 = int_to_ptr.vmem [resolvable:$true] %s153
          %159 = dma.hbm_to_vmem [thread:$0]  %s1, 512, %s154, [#allocation6], 128, 128, 8
        $region16: #{tpu_custom_call.1} parent=11 // pred_fallthru
          _
        // Predicated region
        $region17: #{tpu_custom_call.1} parent=11 // pred_check
          %p160 = pneg %p85
        $region18: #{tpu_custom_call.1} parent=11 // pred_check_branch
          %162 = sbr.rel (%p160) target = $region20
        $region19: #{tpu_custom_call.1} parent=11 // pred_region
          %s164 = ssub.s32 4096, 4096
          %165 = vsyncadd [#allocation6], %s164
          %s166 = sshll.u32 [#allocation7], 4
          %s167 = int_to_ptr.vmem [resolvable:$true] %s166
          %172 = dma.hbm_to_vmem [thread:$0]  %s2, 4096, %s167, [#allocation6], 128, 128, 8
        $region20: #{tpu_custom_call.1} parent=11 // pred_fallthru
          _
        // Predicated region
        $region21: #{tpu_custom_call.1} parent=11 // pred_check
          %p173 = pneg %p106
        $region22: #{tpu_custom_call.1} parent=11 // pred_check_branch
          %175 = sbr.rel (%p173) target = $region24
        $region23: #{tpu_custom_call.1} parent=11 // pred_region
          _
        $region24: #{tpu_custom_call.1} parent=11 // pred_fallthru
          _
      $region12: #{tpu_custom_call.1} parent=5 // pred_fallthru
        _
      %p176 = scmp.lt.s32.totalorder %s17, 2
      // Predicated region
      $region25: #{tpu_custom_call.1} parent=5 // pred_check
        %p177 = pneg %p176
      $region26: #{tpu_custom_call.1} parent=5 // pred_check_branch
        %179 = sbr.rel (%p177) target = $region28
      $region27: #{tpu_custom_call.1} parent=5 // pred_region
        // Predicated region
        $region29: #{tpu_custom_call.1} parent=27 // pred_check
          %p180 = pneg %p37
        $region30: #{tpu_custom_call.1} parent=27 // pred_check_branch
          %182 = sbr.rel (%p180) target = $region32
        $region31: #{tpu_custom_call.1} parent=27 // pred_region
          %s183 = sand.u32 %s27, 1
          %s184 = scalar_lea.sflag [#allocation3], %s183
          %s185 = sand.u32 %s27, 1
          %s186 = smul.addr %s185, 8
          %s187 = scalar_lea.vmem [#allocation2], %s186
          %s189 = ssub.s32 128, 128
          %190 = vsyncadd %s184, %s189
          %s191 = smul.addr %s17, 128
          %s192 = scalar_lea.hbm %s0, %s191
          %s194 = sshll.u32 %s187, 4
          %s195 = int_to_ptr.vmem [resolvable:$true] %s194
          %197 = dma.hbm_to_vmem [thread:$0]  %s192, 128, %s195, %s184
        $region32: #{tpu_custom_call.1} parent=27 // pred_fallthru
          _
      $region28: #{tpu_custom_call.1} parent=5 // pred_fallthru
        _
      %p198 = scmp.le.s32.totalorder 1, %s17
      %p199 = scmp.lt.s32.totalorder %s17, 3
      %p200 = pnand %p198, %p199
      %p201 = pneg %p200
      // Predicated region
      $region33: #{tpu_custom_call.1} parent=5 // pred_check
        _
      $region34: #{tpu_custom_call.1} parent=5 // pred_check_branch
        %203 = sbr.rel (%p200) target = $region36
      $region35: #{tpu_custom_call.1} parent=5 // pred_region
        %s204 = ssub.s32 %s17, 1
        %s205 = sand.u32 %s30, 1
        %s206 = scalar_lea.sflag [#allocation3], %s205
        %s207 = sand.u32 %s30, 1
        %s208 = smul.addr %s207, 8
        %s209 = scalar_lea.vmem [#allocation2], %s208
        // Predicated region
        $region37: #{tpu_custom_call.1} parent=35 // pred_check
          %p210 = pneg %p43
        $region38: #{tpu_custom_call.1} parent=35 // pred_check_branch
          %212 = sbr.rel (%p210) target = $region40
        $region39: #{tpu_custom_call.1} parent=35 // pred_region
          %213 = dma.done %s206, 128
        $region40: #{tpu_custom_call.1} parent=35 // pred_fallthru
          _
        // Predicated region
        $region41: #{tpu_custom_call.1} parent=35 // pred_check
          %p214 = pneg %p64
        $region42: #{tpu_custom_call.1} parent=35 // pred_check_branch
          %216 = sbr.rel (%p214) target = $region44
        $region43: #{tpu_custom_call.1} parent=35 // pred_region
          %217 = dma.done [#allocation6], 512
        $region44: #{tpu_custom_call.1} parent=35 // pred_fallthru
          _
        // Predicated region
        $region45: #{tpu_custom_call.1} parent=35 // pred_check
          %p218 = pneg %p85
        $region46: #{tpu_custom_call.1} parent=35 // pred_check_branch
          %220 = sbr.rel (%p218) target = $region48
        $region47: #{tpu_custom_call.1} parent=35 // pred_region
          %221 = dma.done [#allocation6], 4096
        $region48: #{tpu_custom_call.1} parent=35 // pred_fallthru
          _
        %s222 = sand.u32 %s30, 1
        %s223 = scalar_lea.sflag [#allocation3], %s222
        %s224 = sand.u32 %s30, 1
        %s225 = smul.addr %s224, 8
        %s226 = scalar_lea.vmem [#allocation2], %s225
        %p227 = pneg %p43
        %p228 = pneg %p40
        %p229 = pneg %p64
        %p230 = pneg %p61
        %p231 = pneg %p85
        %p232 = pneg %p82
        %p233 = pneg %p106
        %p234 = pneg %p103
        %p235 = pneg %p132
        %p236 = pneg %p129
        %s237 = sand.u32 %s119, 1
        %s238 = scalar_lea.sflag [#allocation4], %s237
        %s239 = sand.u32 %s119, 1
        %s240 = smul.addr %s239, 8
        %s241 = scalar_lea.vmem [#allocation8], %s240
        %v242 = vld [vmem:[%s209] sm:$0xff]
        %v243 = vld [vmem:[#allocation5] sm:$0xff]
        %v244 = vld [vmem:[#allocation5 + $0x8] sm:$0xff]
        %v245 = vld [vmem:[#allocation5 + $0x10] sm:$0xff]
        %v246 = vld [vmem:[#allocation5 + $0x18] sm:$0xff]
        %v247 = vld [vmem:[%s3] sm:$0x1]
        %v248 = vlaneseq
        %v249 = vshrl.u32 %v248, 7
        %v250 = vsub.s32 0, %v249
        %v251 = vrot.slane %v247, %v250
        %vm252 = vcmask 261120
        %v254 = vsel %vm252, %v242, 0
        %256 = vmatprep.subr.mxu0 0.0
        %257 = vmatpush1.msra.mxu0 0.0
        %258 = vmatprep.subr.mxu0 0.0
        %259 = vmatpush1.msra.mxu0 0.0
        %260 = vmatprep.subr.mxu0 0.0
        %261 = vmatpush1.msra.mxu0 0.0
        %262 = vmatprep.subr.mxu0 0.0
        %263 = vmatpush1.msra.mxu0 0.0
        %264 = vmatprep.subr.mxu0 0.0
        %265 = vmatpush1.msra.mxu0 0.0
        %266 = vmatprep.subr.mxu0 0.0
        %267 = vmatpush1.msra.mxu0 0.0
        %268 = vmatprep.subr.mxu0 0.0
        %269 = vmatpush1.msra.mxu0 0.0
        %270 = vmatprep.subr.mxu0 0.0
        %271 = vmatpush1.msra.mxu0 0.0
        %272 = vmatprep.subr.mxu0 0.0
        %273 = vmatpush1.msra.mxu0 0.0
        %274 = vmatprep.subr.mxu0 0.0
        %275 = vmatpush1.msra.mxu0 0.0
        %276 = vmatprep.subr.mxu0 0.0
        %277 = vmatpush1.msra.mxu0 0.0
        %278 = vmatprep.subr.mxu0 0.0
        %279 = vmatpush1.msra.mxu0 0.0
        %280 = vmatprep.subr.mxu0 0.0
        %281 = vmatpush1.msra.mxu0 %v246
        %282 = vmatprep.subr.mxu0 0.0
        %283 = vmatpush1.msra.mxu0 %v245
        %284 = vmatprep.subr.mxu0 0.0
        %285 = vmatpush1.msra.mxu0 %v244
        %286 = vmatprep.subr.mxu0 0.0
        %287 = vmatpush1.msra.mxu0 %v243
        %288 = vmatprep.subr.mxu0 0.0
        %289 = vmatpush2.msra.mxu0 0.0
        %290 = vmatprep.subr.mxu0 0.0
        %291 = vmatpush2.msra.mxu0 0.0
        %292 = vmatprep.subr.mxu0 0.0
        %293 = vmatpush2.msra.mxu0 0.0
        %294 = vmatprep.subr.mxu0 0.0
        %295 = vmatpush2.msra.mxu0 0.0
        %296 = vmatprep.subr.mxu0 0.0
        %297 = vmatpush2.msra.mxu0 0.0
        %298 = vmatprep.subr.mxu0 0.0
        %299 = vmatpush2.msra.mxu0 0.0
        %300 = vmatprep.subr.mxu0 0.0
        %301 = vmatpush2.msra.mxu0 0.0
        %302 = vmatprep.subr.mxu0 0.0
        %303 = vmatpush2.msra.mxu0 0.0
        %304 = vmatprep.subr.mxu0 0.0
        %305 = vmatpush2.msra.mxu0 0.0
        %306 = vmatprep.subr.mxu0 0.0
        %307 = vmatpush2.msra.mxu0 0.0
        %308 = vmatprep.subr.mxu0 0.0
        %309 = vmatpush2.msra.mxu0 0.0
        %310 = vmatprep.subr.mxu0 0.0
        %311 = vmatpush2.msra.mxu0 0.0
        %312 = vmatprep.subr.mxu0 0.0
        %313 = vmatpush2.msra.mxu0 0.0
        %314 = vmatprep.subr.mxu0 0.0
        %315 = vmatpush2.msra.mxu0 0.0
        %316 = vmatprep.subr.mxu0 0.0
        %317 = vmatpush2.msra.mxu0 0.0
        %318 = vmatprep.subr.mxu0 0.0
        %319 = vmatpush2.msra.mxu0 0.0
        %320 = vmatprep.mubr.f32.mxu0 0.0
        %321 = vmatmul.mubr.f32.gmra.mxu0 %v254
        %v322 = vpop.f32.mrf.mxu0
        %v323 = vadd.f32 %v251, %v322
        %v324 = vpop.f32.mrf.mxu0
        %325 = vdwg.mxu0
        %v326 = vtanh.pop %v323
        %v327 = vld [vmem:[#allocation7] sm:$0xff]
        %v328 = vld [vmem:[#allocation7 + $0x8] sm:$0xff]
        %v329 = vld [vmem:[#allocation7 + $0x10] sm:$0xff]
        %v330 = vld [vmem:[#allocation7 + $0x18] sm:$0xff]
        %v331 = vld [vmem:[#allocation7 + $0x20] sm:$0xff]
        %v332 = vld [vmem:[#allocation7 + $0x28] sm:$0xff]
        %v333 = vld [vmem:[#allocation7 + $0x30] sm:$0xff]
        %v334 = vld [vmem:[#allocation7 + $0x38] sm:$0xff]
        %v335 = vld [vmem:[#allocation7 + $0x40] sm:$0xff]
        %v336 = vld [vmem:[#allocation7 + $0x48] sm:$0xff]
        %v337 = vld [vmem:[#allocation7 + $0x50] sm:$0xff]
        %v338 = vld [vmem:[#allocation7 + $0x58] sm:$0xff]
        %v339 = vld [vmem:[#allocation7 + $0x60] sm:$0xff]
        %v340 = vld [vmem:[#allocation7 + $0x68] sm:$0xff]
        %v341 = vld [vmem:[#allocation7 + $0x70] sm:$0xff]
        %v342 = vld [vmem:[#allocation7 + $0x78] sm:$0xff]
        %v343 = vld [vmem:[%s3 + $0x1] sm:$0x1]
        %v344 = vlaneseq
        %v345 = vshrl.u32 %v344, 7
        %v346 = vsub.s32 0, %v345
        %v347 = vrot.slane %v343, %v346
        %348 = vmatprep.subr.mxu0 0.0
        %349 = vmatpush1.msra.mxu0 %v342
        %350 = vmatprep.subr.mxu0 0.0
        %351 = vmatpush1.msra.mxu0 %v341
        %352 = vmatprep.subr.mxu0 0.0
        %353 = vmatpush1.msra.mxu0 %v340
        %354 = vmatprep.subr.mxu0 0.0
        %355 = vmatpush1.msra.mxu0 %v339
        %356 = vmatprep.subr.mxu0 0.0
        %357 = vmatpush1.msra.mxu0 %v338
        %358 = vmatprep.subr.mxu0 0.0
        %359 = vmatpush1.msra.mxu0 %v337
        %360 = vmatprep.subr.mxu0 0.0
        %361 = vmatpush1.msra.mxu0 %v336
        %362 = vmatprep.subr.mxu0 0.0
        %363 = vmatpush1.msra.mxu0 %v335
        %364 = vmatprep.subr.mxu0 0.0
        %365 = vmatpush1.msra.mxu0 %v334
        %366 = vmatprep.subr.mxu0 0.0
        %367 = vmatpush1.msra.mxu0 %v333
        %368 = vmatprep.subr.mxu0 0.0
        %369 = vmatpush1.msra.mxu0 %v332
        %370 = vmatprep.subr.mxu0 0.0
        %371 = vmatpush1.msra.mxu0 %v331
        %372 = vmatprep.subr.mxu0 0.0
        %373 = vmatpush1.msra.mxu0 %v330
        %374 = vmatprep.subr.mxu0 0.0
        %375 = vmatpush1.msra.mxu0 %v329
        %376 = vmatprep.subr.mxu0 0.0
        %377 = vmatpush1.msra.mxu0 %v328
        %378 = vmatprep.subr.mxu0 0.0
        %379 = vmatpush1.msra.mxu0 %v327
        %380 = vmatprep.subr.mxu0 0.0
        %381 = vmatpush2.msra.mxu0 0.0
        %382 = vmatprep.subr.mxu0 0.0
        %383 = vmatpush2.msra.mxu0 0.0
        %384 = vmatprep.subr.mxu0 0.0
        %385 = vmatpush2.msra.mxu0 0.0
        %386 = vmatprep.subr.mxu0 0.0
        %387 = vmatpush2.msra.mxu0 0.0
        %388 = vmatprep.subr.mxu0 0.0
        %389 = vmatpush2.msra.mxu0 0.0
        %390 = vmatprep.subr.mxu0 0.0
        %391 = vmatpush2.msra.mxu0 0.0
        %392 = vmatprep.subr.mxu0 0.0
        %393 = vmatpush2.msra.mxu0 0.0
        %394 = vmatprep.subr.mxu0 0.0
        %395 = vmatpush2.msra.mxu0 0.0
        %396 = vmatprep.subr.mxu0 0.0
        %397 = vmatpush2.msra.mxu0 0.0
        %398 = vmatprep.subr.mxu0 0.0
        %399 = vmatpush2.msra.mxu0 0.0
        %400 = vmatprep.subr.mxu0 0.0
        %401 = vmatpush2.msra.mxu0 0.0
        %402 = vmatprep.subr.mxu0 0.0
        %403 = vmatpush2.msra.mxu0 0.0
        %404 = vmatprep.subr.mxu0 0.0
        %405 = vmatpush2.msra.mxu0 0.0
        %406 = vmatprep.subr.mxu0 0.0
        %407 = vmatpush2.msra.mxu0 0.0
        %408 = vmatprep.subr.mxu0 0.0
        %409 = vmatpush2.msra.mxu0 0.0
        %410 = vmatprep.subr.mxu0 0.0
        %411 = vmatpush2.msra.mxu0 0.0
        %412 = vmatprep.mubr.f32.mxu0 0.0
        %413 = vmatmul.mubr.f32.gmra.mxu0 %v326
        %v414 = vpop.f32.mrf.mxu0
        %v415 = vadd.f32 %v347, %v414
        %v416 = vpop.f32.mrf.mxu0
        %417 = vdwg.mxu0
        %v418 = vtanh.pop %v415
        %s419 = scalar_lea.vmem [#allocation7], 128
        %v420 = vld [vmem:[%s419] sm:$0xff]
        %v421 = vld [vmem:[%s419 + $0x8] sm:$0xff]
        %v422 = vld [vmem:[%s419 + $0x10] sm:$0xff]
        %v423 = vld [vmem:[%s419 + $0x18] sm:$0xff]
        %v424 = vld [vmem:[%s419 + $0x20] sm:$0xff]
        %v425 = vld [vmem:[%s419 + $0x28] sm:$0xff]
        %v426 = vld [vmem:[%s419 + $0x30] sm:$0xff]
        %v427 = vld [vmem:[%s419 + $0x38] sm:$0xff]
        %v428 = vld [vmem:[%s419 + $0x40] sm:$0xff]
        %v429 = vld [vmem:[%s419 + $0x48] sm:$0xff]
        %v430 = vld [vmem:[%s419 + $0x50] sm:$0xff]
        %v431 = vld [vmem:[%s419 + $0x58] sm:$0xff]
        %v432 = vld [vmem:[%s419 + $0x60] sm:$0xff]
        %v433 = vld [vmem:[%s419 + $0x68] sm:$0xff]
        %v434 = vld [vmem:[%s419 + $0x70] sm:$0xff]
        %v435 = vld [vmem:[%s419 + $0x78] sm:$0xff]
        %v436 = vld [vmem:[%s3 + $0x2] sm:$0x1]
        %v437 = vlaneseq
        %v438 = vshrl.u32 %v437, 7
        %v439 = vsub.s32 0, %v438
        %v440 = vrot.slane %v436, %v439
        %441 = vmatprep.subr.mxu0 0.0
        %442 = vmatpush1.msra.mxu0 %v435
        %443 = vmatprep.subr.mxu0 0.0
        %444 = vmatpush1.msra.mxu0 %v434
        %445 = vmatprep.subr.mxu0 0.0
        %446 = vmatpush1.msra.mxu0 %v433
        %447 = vmatprep.subr.mxu0 0.0
        %448 = vmatpush1.msra.mxu0 %v432
        %449 = vmatprep.subr.mxu0 0.0
        %450 = vmatpush1.msra.mxu0 %v431
        %451 = vmatprep.subr.mxu0 0.0
        %452 = vmatpush1.msra.mxu0 %v430
        %453 = vmatprep.subr.mxu0 0.0
        %454 = vmatpush1.msra.mxu0 %v429
        %455 = vmatprep.subr.mxu0 0.0
        %456 = vmatpush1.msra.mxu0 %v428
        %457 = vmatprep.subr.mxu0 0.0
        %458 = vmatpush1.msra.mxu0 %v427
        %459 = vmatprep.subr.mxu0 0.0
        %460 = vmatpush1.msra.mxu0 %v426
        %461 = vmatprep.subr.mxu0 0.0
        %462 = vmatpush1.msra.mxu0 %v425
        %463 = vmatprep.subr.mxu0 0.0
        %464 = vmatpush1.msra.mxu0 %v424
        %465 = vmatprep.subr.mxu0 0.0
        %466 = vmatpush1.msra.mxu0 %v423
        %467 = vmatprep.subr.mxu0 0.0
        %468 = vmatpush1.msra.mxu0 %v422
        %469 = vmatprep.subr.mxu0 0.0
        %470 = vmatpush1.msra.mxu0 %v421
        %471 = vmatprep.subr.mxu0 0.0
        %472 = vmatpush1.msra.mxu0 %v420
        %473 = vmatprep.subr.mxu0 0.0
        %474 = vmatpush2.msra.mxu0 0.0
        %475 = vmatprep.subr.mxu0 0.0
        %476 = vmatpush2.msra.mxu0 0.0
        %477 = vmatprep.subr.mxu0 0.0
        %478 = vmatpush2.msra.mxu0 0.0
        %479 = vmatprep.subr.mxu0 0.0
        %480 = vmatpush2.msra.mxu0 0.0
        %481 = vmatprep.subr.mxu0 0.0
        %482 = vmatpush2.msra.mxu0 0.0
        %483 = vmatprep.subr.mxu0 0.0
        %484 = vmatpush2.msra.mxu0 0.0
        %485 = vmatprep.subr.mxu0 0.0
        %486 = vmatpush2.msra.mxu0 0.0
        %487 = vmatprep.subr.mxu0 0.0
        %488 = vmatpush2.msra.mxu0 0.0
        %489 = vmatprep.subr.mxu0 0.0
        %490 = vmatpush2.msra.mxu0 0.0
        %491 = vmatprep.subr.mxu0 0.0
        %492 = vmatpush2.msra.mxu0 0.0
        %493 = vmatprep.subr.mxu0 0.0
        %494 = vmatpush2.msra.mxu0 0.0
        %495 = vmatprep.subr.mxu0 0.0
        %496 = vmatpush2.msra.mxu0 0.0
        %497 = vmatprep.subr.mxu0 0.0
        %498 = vmatpush2.msra.mxu0 0.0
        %499 = vmatprep.subr.mxu0 0.0
        %500 = vmatpush2.msra.mxu0 0.0
        %501 = vmatprep.subr.mxu0 0.0
        %502 = vmatpush2.msra.mxu0 0.0
        %503 = vmatprep.subr.mxu0 0.0
        %504 = vmatpush2.msra.mxu0 0.0
        %505 = vmatprep.mubr.f32.mxu0 0.0
        %506 = vmatmul.mubr.f32.gmra.mxu0 %v418
        %v507 = vpop.f32.mrf.mxu0
        %v508 = vadd.f32 %v440, %v507
        %v509 = vpop.f32.mrf.mxu0
        %510 = vdwg.mxu0
        %511 = vst [vmem:[%s241] sm:$0xff] %v508
        %s512 = sand.u32 %s119, 1
        %s513 = scalar_lea.sflag [#allocation4], %s512
        %s514 = sand.u32 %s119, 1
        %s515 = smul.addr %s514, 8
        %s516 = scalar_lea.vmem [#allocation8], %s515
        // Predicated region
        $region49: #{tpu_custom_call.1} parent=35 // pred_check
          %p517 = pneg %p129
        $region50: #{tpu_custom_call.1} parent=35 // pred_check_branch
          %519 = sbr.rel (%p517) target = $region52
        $region51: #{tpu_custom_call.1} parent=35 // pred_region
          %s521 = ssub.s32 128, 128
          %522 = vsyncadd %s513, %s521
          %s523 = smul.addr %s22, 128
          %s524 = scalar_lea.hbm %s4, %s523
          %s526 = sshll.u32 %s516, 4
          %s527 = int_to_ptr.vmem [resolvable:$true] %s526
          %529 = dma.vmem_to_hbm [thread:$0]  %s527, 128, %s524, %s513
        $region52: #{tpu_custom_call.1} parent=35 // pred_fallthru
          _
      $region36: #{tpu_custom_call.1} parent=5 // pred_fallthru
        _
      %p530 = scmp.le.s32.totalorder 2, %s17
      // Predicated region
      $region53: #{tpu_custom_call.1} parent=5 // pred_check
        %p531 = pneg %p530
      $region54: #{tpu_custom_call.1} parent=5 // pred_check_branch
        %533 = sbr.rel (%p531) target = $region56
      $region55: #{tpu_custom_call.1} parent=5 // pred_region
        %s534 = ssub.s32 %s17, 2
        // Predicated region
        $region57: #{tpu_custom_call.1} parent=55 // pred_check
          %p535 = pneg %p135
        $region58: #{tpu_custom_call.1} parent=55 // pred_check_branch
          %537 = sbr.rel (%p535) target = $region60
        $region59: #{tpu_custom_call.1} parent=55 // pred_region
          %s538 = sand.u32 %s120, 1
          %s539 = scalar_lea.sflag [#allocation4], %s538
          %s540 = sand.u32 %s120, 1
          %s541 = smul.addr %s540, 8
          %s542 = scalar_lea.vmem [#allocation8], %s541
          %543 = dma.done %s539, 128
        $region60: #{tpu_custom_call.1} parent=55 // pred_fallthru
          _
      $region56: #{tpu_custom_call.1} parent=5 // pred_fallthru
        _
    $region6: #{tpu_custom_call.1} parent=1 // loop_footer
      %s21 = sadd.s32 1, %s17
    $region7: #{tpu_custom_call.1} parent=1 // loop_footer_branch
      %16 = sbr.rel target = $region3
    $region8: #{tpu_custom_call.1} parent=1 // loop_exit
      _
    %544 = vsyncpa [#allocation3], 1
    %s545 = scalar_lea.sflag [#allocation3], 1
    %546 = vsyncpa %s545, 1
    %547 = vsyncpa [#allocation6], 1
    %548 = vsyncpa [#allocation4], 1
    %s549 = scalar_lea.sflag [#allocation4], 1
    %550 = vsyncpa %s549, 1

</llo_original>
